<compile_context>
chip_gen: v7x
topology: tpu7x:2x2x1
jax: 0.10.0
libtpu: 0.0.40
codegen_flags: <defaults>
</compile_context>

<pallas_src>
import jax
import jax.numpy as jnp
from jax import lax
from jax.experimental import pallas as pl
from jax.experimental.pallas import tpu as pltpu


def _round_up(x, m):
    return (x + m - 1) // m * m


def _flash_attn_kernel(q_ref, k_ref, v_ref, mask_ref, w_ref, b_ref,   # inputs
                       o_ref,                                          # output
                       qp_ref, m_ref, l_ref, acc_ref):                 # scratch
    kv = pl.program_id(2)

    @pl.when(kv == 0)
    def _init():
        # Hoisted q projection: computed once per (batch, q-tile), reused for
        # every K/V tile.  MXU matmul with f32 accumulation.
        # TODO(synk): Dropout on the projected q is identity in eval mode;
        # training-mode dropout (pltpu.prng_random_bits) not implemented.
        qp = jnp.dot(q_ref[0], w_ref[...],
                     preferred_element_type=jnp.float32) + b_ref[...]
        qp_ref[...] = qp.astype(qp_ref.dtype)
        m_ref[...] = jnp.full(m_ref.shape, -jnp.inf, dtype=m_ref.dtype)
        l_ref[...] = jnp.zeros(l_ref.shape, dtype=l_ref.dtype)
        acc_ref[...] = jnp.zeros(acc_ref.shape, dtype=acc_ref.dtype)

    qp = qp_ref[...]                       # (TQ, Hp)
    k = k_ref[0]                           # (TK, Hp)
    v = v_ref[0]                           # (TK, Hp)

    # Scores: contract over H on both operands (no k.T materialization).
    s = lax.dot_general(qp, k,
                        dimension_numbers=(((1,), (1,)), ((), ())),
                        preferred_element_type=jnp.float32)   # (TQ, TK)

    # Additive -1e6 mask, expressed as a select on the (binary) int8 mask.
    keep = mask_ref[0].astype(jnp.int32) != 0
    s = jnp.where(keep, s, s - 1000000.0)

    # Online softmax update.
    m_prev = m_ref[...]
    m_new = jnp.maximum(m_prev, jnp.max(s, axis=-1, keepdims=True))
    alpha = jnp.exp(m_prev - m_new)
    p = jnp.exp(s - m_new)                                     # (TQ, TK) f32
    l_ref[...] = alpha * l_ref[...] + jnp.sum(p, axis=-1, keepdims=True)
    acc_ref[...] = alpha * acc_ref[...] + jnp.dot(
        p.astype(v.dtype), v, preferred_element_type=jnp.float32)
    m_ref[...] = m_new

    @pl.when(kv == pl.num_programs(2) - 1)
    def _finalize():
        # Normalize the (TQ, Hp) accumulator (not the (TQ, TK) prob matrix).
        inv_l = 1.0 / l_ref[...]
        o_ref[0] = (acc_ref[...] * inv_l).astype(o_ref.dtype)


def attention_pallas(q, k, v, attention_mask, weight, bias, *,
                     tq=256, tk=256):
    """q: (B, Sq, H), k/v: (B, Sk, H), mask: broadcastable to (B, Sq, Sk) or
    None, weight: torch-layout (H_out, H_in), bias: (H,)."""
    B, Sq, H = q.shape
    Sk = k.shape[1]
    dtype = q.dtype

    # Tile sizes: lane-dense K tiles (multiple of 128), sublane-aligned Q tiles.
    Hp = _round_up(H, 128)
    TK = max(128, min(_round_up(Sk, 128), tk))
    TQ = max(8, min(_round_up(Sq, 8), tq))
    Sq_p = _round_up(Sq, TQ)
    Sk_p = _round_up(Sk, TK)

    def pad23(x, s1, s2):
        p1, p2 = s1 - x.shape[1], s2 - x.shape[2]
        if p1 or p2:
            x = jnp.pad(x, ((0, 0), (0, p1), (0, p2)))
        return x

    q_p = pad23(q, Sq_p, Hp)
    k_p = pad23(k, Sk_p, Hp)
    v_p = pad23(v, Sk_p, Hp)

    # int8 binary mask (4x less DMA than f32); padded keys are masked out.
    if attention_mask is None:
        mask = jnp.ones((B, Sq, Sk), dtype=jnp.int8)
    else:
        mask = (jnp.broadcast_to(attention_mask, (B, Sq, Sk)) != 0
                ).astype(jnp.int8)
    mask = pad23(mask, Sq_p, Sk_p)

    # Weight transposed to (H_in, H_out) so the kernel does a row-major matmul.
    w_t = jnp.pad(jnp.transpose(weight).astype(dtype),
                  ((0, Hp - H), (0, Hp - H)))
    b2d = jnp.pad(bias.astype(dtype), (0, Hp - H)).reshape(1, Hp)

    grid = (B, Sq_p // TQ, Sk_p // TK)

    out = pl.pallas_call(
        _flash_attn_kernel,
        out_shape=jax.ShapeDtypeStruct((B, Sq_p, Hp), dtype),
        grid_spec=pltpu.PrefetchScalarGridSpec(
            num_scalar_prefetch=0,
            grid=grid,
            in_specs=[
                pl.BlockSpec((1, TQ, Hp), lambda b, qi, ki: (b, qi, 0)),   # q
                pl.BlockSpec((1, TK, Hp), lambda b, qi, ki: (b, ki, 0)),   # k
                pl.BlockSpec((1, TK, Hp), lambda b, qi, ki: (b, ki, 0)),   # v
                pl.BlockSpec((1, TQ, TK), lambda b, qi, ki: (b, qi, ki)),  # mask
                # Constant index_map => fetched once by the pipeline.
                pl.BlockSpec((Hp, Hp), lambda b, qi, ki: (0, 0)),          # W^T
                pl.BlockSpec((1, Hp), lambda b, qi, ki: (0, 0)),           # bias
            ],
            out_specs=pl.BlockSpec((1, TQ, Hp), lambda b, qi, ki: (b, qi, 0)),
            scratch_shapes=[
                pltpu.VMEM((TQ, Hp), dtype),        # projected q tile
                pltpu.VMEM((TQ, 1), jnp.float32),   # running max
                pltpu.VMEM((TQ, 1), jnp.float32),   # running denom
                pltpu.VMEM((TQ, Hp), jnp.float32),  # output accumulator
            ],
        ),
        compiler_params=pltpu.CompilerParams(
            dimension_semantics=("parallel", "parallel", "arbitrary"),
            vmem_limit_bytes=32 * 1024 * 1024),
    )(q_p, k_p, v_p, mask, w_t, b2d)

    return out[:, :Sq, :H]


def attention_reference(q, k, v, attention_mask, weight, bias):
    qp = jnp.einsum("bsh,oh->bso", q, weight) + bias
    a = jnp.einsum("bqh,bkh->bqk", qp, k)
    if attention_mask is not None:
        a = a - 1000000.0 * (1.0 - attention_mask)
    a = jax.nn.softmax(a, axis=-1)
    return jnp.einsum("bqk,bkh->bqh", a, v)


if __name__ == "__main__":
    B, Sq, Sk, H = 2, 8, 8, 32
    key = jax.random.PRNGKey(0)
    kq, kk, kv, kw, kb, km = jax.random.split(key, 6)

    q = jax.random.normal(kq, (B, Sq, H), dtype=jnp.float32)
    k = jax.random.normal(kk, (B, Sk, H), dtype=jnp.float32)
    v = jax.random.normal(kv, (B, Sk, H), dtype=jnp.float32)

    # Deterministic Linear params (torch layout: weight (H_out, H_in), bias (H,))
    weight = jax.random.normal(kw, (H, H), dtype=jnp.float32) * (1.0 / jnp.sqrt(H))
    bias = jax.random.normal(kb, (H,), dtype=jnp.float32) * 0.01

    # Binary attention mask (B, Sq, Sk)
    attention_mask = (jax.random.uniform(km, (B, Sq, Sk)) > 0.2).astype(jnp.float32)

    out = attention_pallas(q, k, v, attention_mask, weight, bias)
    out = jax.block_until_ready(out)

    ref = attention_reference(q, k, v, attention_mask, weight, bias)
    assert out.shape == (B, Sq, H)
    assert jnp.allclose(out, ref, atol=1e-4, rtol=1e-4), "mismatch vs reference"

    # Also exercise the mask=None path.
    out_nm = jax.block_until_ready(
        attention_pallas(q, k, v, None, weight, bias))
    ref_nm = attention_reference(q, k, v, None, weight, bias)
    assert jnp.allclose(out_nm, ref_nm, atol=1e-4, rtol=1e-4), "mismatch (no mask)"

    print("KERNEL_OK")
</pallas_src>

<mosaic_0001>
module attributes {stable_mosaic.version = 11 : i64} {
  func.func @_flash_attn_kernel(%arg0: i32, %arg1: i32, %arg2: i32, %arg3: memref<1x8x128xf32, #tpu.memory_space<vmem>>, %arg4: memref<1x128x128xf32, #tpu.memory_space<vmem>>, %arg5: memref<1x128x128xf32, #tpu.memory_space<vmem>>, %arg6: memref<1x8x128xi8, #tpu.memory_space<vmem>>, %arg7: memref<128x128xf32, #tpu.memory_space<vmem>>, %arg8: memref<1x128xf32, #tpu.memory_space<vmem>>, %arg9: memref<1x8x128xf32, #tpu.memory_space<vmem>>, %arg10: memref<8x128xf32, #tpu.memory_space<vmem>>, %arg11: memref<8x1xf32, #tpu.memory_space<vmem>>, %arg12: memref<8x1xf32, #tpu.memory_space<vmem>>, %arg13: memref<8x128xf32, #tpu.memory_space<vmem>>) attributes {dimension_semantics = [#tpu.dimension_semantics<parallel>, #tpu.dimension_semantics<parallel>, #tpu.dimension_semantics<arbitrary>], iteration_bounds = array<i64: 2, 1, 1>, scalar_prefetch = 0 : i64, scratch_operands = 4 : i64, tpu.core_type = #tpu.core_type<tc>, window_params = [{transform_indices = @transform_0, window_bounds = array<i64: 1, 8, 128>}, {transform_indices = @transform_1, window_bounds = array<i64: 1, 128, 128>}, {transform_indices = @transform_2, window_bounds = array<i64: 1, 128, 128>}, {transform_indices = @transform_3, window_bounds = array<i64: 1, 8, 128>}, {pipeline_mode = #tpu.pipeline_mode<synchronous>, transform_indices = @transform_4, window_bounds = array<i64: 128, 128>}, {pipeline_mode = #tpu.pipeline_mode<synchronous>, transform_indices = @transform_5, window_bounds = array<i64: 1, 128>}, {transform_indices = @transform_6, window_bounds = array<i64: 1, 8, 128>}]} {
    %c0_i32 = arith.constant 0 : i32
    %0 = arith.cmpi eq, %arg2, %c0_i32 : i32
    %1 = arith.extui %0 : i1 to i32
    %c0_i32_0 = arith.constant 0 : i32
    %2 = arith.cmpi ne, %1, %c0_i32_0 : i32
    scf.if %2 {
      %c0_30 = arith.constant 0 : index
      %c0_31 = arith.constant 0 : index
      %c0_32 = arith.constant 0 : index
      %42 = vector.load %arg3[%c0_30, %c0_31, %c0_32] : memref<1x8x128xf32, #tpu.memory_space<vmem>>, vector<1x8x128xf32>
      %43 = vector.shape_cast %42 : vector<1x8x128xf32> to vector<8x128xf32>
      %c0_33 = arith.constant 0 : index
      %c0_34 = arith.constant 0 : index
      %44 = vector.load %arg7[%c0_33, %c0_34] : memref<128x128xf32, #tpu.memory_space<vmem>>, vector<128x128xf32>
      %cst_35 = arith.constant dense<0.000000e+00> : vector<8x128xf32>
      %45 = tpu.matmul %43, %44, %cst_35 {dimension_numbers = #tpu.dot_dimension_numbers<[1], [0], [0], [1], [0, 0, 1, 1], [], []>} : vector<8x128xf32>, vector<128x128xf32>, vector<8x128xf32> -> vector<8x128xf32>
      %c0_36 = arith.constant 0 : index
      %c0_37 = arith.constant 0 : index
      %46 = vector.load %arg8[%c0_36, %c0_37] : memref<1x128xf32, #tpu.memory_space<vmem>>, vector<1x128xf32>
      %47 = vector.broadcast %46 : vector<1x128xf32> to vector<8x128xf32>
      %48 = arith.addf %45, %47 : vector<8x128xf32>
      %c0_38 = arith.constant 0 : index
      %c0_39 = arith.constant 0 : index
      %49 = vector.load %arg10[%c0_38, %c0_39] : memref<8x128xf32, #tpu.memory_space<vmem>>, vector<8x128xf32>
      tpu.vector_store %arg10[%c0_38, %c0_39], %48 {strides = array<i32>} : memref<8x128xf32, #tpu.memory_space<vmem>>, vector<8x128xf32>,
      %cst_40 = arith.constant 0xFF800000 : f32
      %50 = vector.broadcast %cst_40 : f32 to vector<8x1xf32>
      %c0_41 = arith.constant 0 : index
      %c0_42 = arith.constant 0 : index
      %51 = vector.load %arg11[%c0_41, %c0_42] : memref<8x1xf32, #tpu.memory_space<vmem>>, vector<8x1xf32>
      tpu.vector_store %arg11[%c0_41, %c0_42], %50 {strides = array<i32>} : memref<8x1xf32, #tpu.memory_space<vmem>>, vector<8x1xf32>,
      %cst_43 = arith.constant 0.000000e+00 : f32
      %52 = vector.broadcast %cst_43 : f32 to vector<8x1xf32>
      %c0_44 = arith.constant 0 : index
      %c0_45 = arith.constant 0 : index
      %53 = vector.load %arg12[%c0_44, %c0_45] : memref<8x1xf32, #tpu.memory_space<vmem>>, vector<8x1xf32>
      tpu.vector_store %arg12[%c0_44, %c0_45], %52 {strides = array<i32>} : memref<8x1xf32, #tpu.memory_space<vmem>>, vector<8x1xf32>,
      %cst_46 = arith.constant 0.000000e+00 : f32
      %54 = vector.broadcast %cst_46 : f32 to vector<8x128xf32>
      %c0_47 = arith.constant 0 : index
      %c0_48 = arith.constant 0 : index
      %55 = vector.load %arg13[%c0_47, %c0_48] : memref<8x128xf32, #tpu.memory_space<vmem>>, vector<8x128xf32>
      tpu.vector_store %arg13[%c0_47, %c0_48], %54 {strides = array<i32>} : memref<8x128xf32, #tpu.memory_space<vmem>>, vector<8x128xf32>,
    } else {
    }
    %c0 = arith.constant 0 : index
    %c0_1 = arith.constant 0 : index
    %3 = vector.load %arg10[%c0, %c0_1] : memref<8x128xf32, #tpu.memory_space<vmem>>, vector<8x128xf32>
    %c0_2 = arith.constant 0 : index
    %c0_3 = arith.constant 0 : index
    %c0_4 = arith.constant 0 : index
    %4 = vector.load %arg4[%c0_2, %c0_3, %c0_4] : memref<1x128x128xf32, #tpu.memory_space<vmem>>, vector<1x128x128xf32>
    %5 = vector.shape_cast %4 : vector<1x128x128xf32> to vector<128x128xf32>
    %c0_5 = arith.constant 0 : index
    %c0_6 = arith.constant 0 : index
    %c0_7 = arith.constant 0 : index
    %6 = vector.load %arg5[%c0_5, %c0_6, %c0_7] : memref<1x128x128xf32, #tpu.memory_space<vmem>>, vector<1x128x128xf32>
    %7 = vector.shape_cast %6 : vector<1x128x128xf32> to vector<128x128xf32>
    %cst = arith.constant dense<0.000000e+00> : vector<8x128xf32>
    %8 = tpu.matmul %3, %5, %cst {dimension_numbers = #tpu.dot_dimension_numbers<[1], [1], [0], [0], [0, 0, 1, 0], [], []>} : vector<8x128xf32>, vector<128x128xf32>, vector<8x128xf32> -> vector<8x128xf32>
    %c0_8 = arith.constant 0 : index
    %c0_9 = arith.constant 0 : index
    %c0_10 = arith.constant 0 : index
    %9 = vector.load %arg6[%c0_8, %c0_9, %c0_10] : memref<1x8x128xi8, #tpu.memory_space<vmem>>, vector<1x8x128xi8>
    %10 = vector.shape_cast %9 : vector<1x8x128xi8> to vector<8x128xi8>
    %11 = arith.extsi %10 : vector<8x128xi8> to vector<8x128xi32>
    %c0_i32_11 = arith.constant 0 : i32
    %12 = vector.broadcast %c0_i32_11 : i32 to vector<8x128xi32>
    %13 = arith.cmpi ne, %11, %12 : vector<8x128xi32>
    %cst_12 = arith.constant 1.000000e+06 : f32
    %14 = vector.broadcast %cst_12 : f32 to vector<8x128xf32>
    %15 = arith.subf %8, %14 : vector<8x128xf32>
    %16 = arith.select %13, %8, %15 : vector<8x128xi1>, vector<8x128xf32>
    %c0_13 = arith.constant 0 : index
    %c0_14 = arith.constant 0 : index
    %17 = vector.load %arg11[%c0_13, %c0_14] : memref<8x1xf32, #tpu.memory_space<vmem>>, vector<8x1xf32>
    %cst_15 = arith.constant dense<0xFF800000> : vector<8xf32>
    %18 = vector.multi_reduction <maximumf>, %16, %cst_15 [1] : vector<8x128xf32> to vector<8xf32>
    %19 = vector.shape_cast %18 : vector<8xf32> to vector<8x1xf32>
    %20 = arith.maximumf %17, %19 : vector<8x1xf32>
    %21 = arith.subf %17, %20 : vector<8x1xf32>
    %22 = math.exp %21 : vector<8x1xf32>
    %23 = vector.broadcast %20 : vector<8x1xf32> to vector<8x128xf32>
    %24 = arith.subf %16, %23 : vector<8x128xf32>
    %25 = math.exp %24 : vector<8x128xf32>
    %c0_16 = arith.constant 0 : index
    %c0_17 = arith.constant 0 : index
    %26 = vector.load %arg12[%c0_16, %c0_17] : memref<8x1xf32, #tpu.memory_space<vmem>>, vector<8x1xf32>
    %27 = arith.mulf %22, %26 : vector<8x1xf32>
    %cst_18 = arith.constant dense<0.000000e+00> : vector<8xf32>
    %28 = vector.multi_reduction <add>, %25, %cst_18 [1] : vector<8x128xf32> to vector<8xf32>
    %29 = vector.shape_cast %28 : vector<8xf32> to vector<8x1xf32>
    %30 = arith.addf %27, %29 : vector<8x1xf32>
    %c0_19 = arith.constant 0 : index
    %c0_20 = arith.constant 0 : index
    %31 = vector.load %arg12[%c0_19, %c0_20] : memref<8x1xf32, #tpu.memory_space<vmem>>, vector<8x1xf32>
    tpu.vector_store %arg12[%c0_19, %c0_20], %30 {strides = array<i32>} : memref<8x1xf32, #tpu.memory_space<vmem>>, vector<8x1xf32>,
    %c0_21 = arith.constant 0 : index
    %c0_22 = arith.constant 0 : index
    %32 = vector.load %arg13[%c0_21, %c0_22] : memref<8x128xf32, #tpu.memory_space<vmem>>, vector<8x128xf32>
    %33 = vector.broadcast %22 : vector<8x1xf32> to vector<8x128xf32>
    %34 = arith.mulf %33, %32 : vector<8x128xf32>
    %cst_23 = arith.constant dense<0.000000e+00> : vector<8x128xf32>
    %35 = tpu.matmul %25, %7, %cst_23 {dimension_numbers = #tpu.dot_dimension_numbers<[1], [0], [0], [1], [0, 0, 1, 1], [], []>} : vector<8x128xf32>, vector<128x128xf32>, vector<8x128xf32> -> vector<8x128xf32>
    %36 = arith.addf %34, %35 : vector<8x128xf32>
    %c0_24 = arith.constant 0 : index
    %c0_25 = arith.constant 0 : index
    %37 = vector.load %arg13[%c0_24, %c0_25] : memref<8x128xf32, #tpu.memory_space<vmem>>, vector<8x128xf32>
    tpu.vector_store %arg13[%c0_24, %c0_25], %36 {strides = array<i32>} : memref<8x128xf32, #tpu.memory_space<vmem>>, vector<8x128xf32>,
    %c0_26 = arith.constant 0 : index
    %c0_27 = arith.constant 0 : index
    %38 = vector.load %arg11[%c0_26, %c0_27] : memref<8x1xf32, #tpu.memory_space<vmem>>, vector<8x1xf32>
    tpu.vector_store %arg11[%c0_26, %c0_27], %20 {strides = array<i32>} : memref<8x1xf32, #tpu.memory_space<vmem>>, vector<8x1xf32>,
    %c0_i32_28 = arith.constant 0 : i32
    %39 = arith.cmpi eq, %arg2, %c0_i32_28 : i32
    %40 = arith.extui %39 : i1 to i32
    %c0_i32_29 = arith.constant 0 : i32
    %41 = arith.cmpi ne, %40, %c0_i32_29 : i32
    scf.if %41 {
      %c0_30 = arith.constant 0 : index
      %c0_31 = arith.constant 0 : index
      %42 = vector.load %arg12[%c0_30, %c0_31] : memref<8x1xf32, #tpu.memory_space<vmem>>, vector<8x1xf32>
      %cst_32 = arith.constant 1.000000e+00 : f32
      %43 = vector.broadcast %cst_32 : f32 to vector<8x1xf32>
      %44 = arith.divf %43, %42 : vector<8x1xf32>
      %c0_33 = arith.constant 0 : index
      %c0_34 = arith.constant 0 : index
      %45 = vector.load %arg13[%c0_33, %c0_34] : memref<8x128xf32, #tpu.memory_space<vmem>>, vector<8x128xf32>
      %46 = vector.broadcast %44 : vector<8x1xf32> to vector<8x128xf32>
      %47 = arith.mulf %45, %46 : vector<8x128xf32>
      %c0_35 = arith.constant 0 : index
      %c0_36 = arith.constant 0 : index
      %c0_37 = arith.constant 0 : index
      %48 = vector.load %arg9[%c0_35, %c0_36, %c0_37] : memref<1x8x128xf32, #tpu.memory_space<vmem>>, vector<1x8x128xf32>
      %49 = vector.shape_cast %48 : vector<1x8x128xf32> to vector<8x128xf32>
      %50 = vector.shape_cast %47 : vector<8x128xf32> to vector<1x8x128xf32>
      tpu.vector_store %arg9[%c0_35, %c0_36, %c0_37], %50 {strides = array<i32>} : memref<1x8x128xf32, #tpu.memory_space<vmem>>, vector<1x8x128xf32>,
    } else {
    }
    return
  }
  func.func @transform_0(%arg0: i32, %arg1: i32, %arg2: i32) -> (i32, i32, i32) {
    %c0_i32 = arith.constant 0 : i32
    %c0_i32_0 = arith.constant 0 : i32
    return %arg0, %arg1, %c0_i32 : i32, i32, i32
  }
  func.func @transform_1(%arg0: i32, %arg1: i32, %arg2: i32) -> (i32, i32, i32) {
    %c0_i32 = arith.constant 0 : i32
    %c0_i32_0 = arith.constant 0 : i32
    return %arg0, %arg2, %c0_i32 : i32, i32, i32
  }
  func.func @transform_2(%arg0: i32, %arg1: i32, %arg2: i32) -> (i32, i32, i32) {
    %c0_i32 = arith.constant 0 : i32
    %c0_i32_0 = arith.constant 0 : i32
    return %arg0, %arg2, %c0_i32 : i32, i32, i32
  }
  func.func @transform_3(%arg0: i32, %arg1: i32, %arg2: i32) -> (i32, i32, i32) {
    %c0_i32 = arith.constant 0 : i32
    return %arg0, %arg1, %arg2 : i32, i32, i32
  }
  func.func @transform_4(%arg0: i32, %arg1: i32, %arg2: i32) -> (i32, i32) {
    %c0_i32 = arith.constant 0 : i32
    %c0_i32_0 = arith.constant 0 : i32
    %c0_i32_1 = arith.constant 0 : i32
    return %c0_i32, %c0_i32_0 : i32, i32
  }
  func.func @transform_5(%arg0: i32, %arg1: i32, %arg2: i32) -> (i32, i32) {
    %c0_i32 = arith.constant 0 : i32
    %c0_i32_0 = arith.constant 0 : i32
    %c0_i32_1 = arith.constant 0 : i32
    return %c0_i32, %c0_i32_0 : i32, i32
  }
  func.func @transform_6(%arg0: i32, %arg1: i32, %arg2: i32) -> (i32, i32, i32) {
    %c0_i32 = arith.constant 0 : i32
    %c0_i32_0 = arith.constant 0 : i32
    return %arg0, %arg1, %c0_i32 : i32, i32, i32
  }
}

</mosaic_0001>

<llo_original>
// kernel: tpu_custom_call.1
$region0: #{tpu_custom_call.1}
  #allocation0 [shape = 'u32[]', space=smem, size = 0x4, offset = 0x4, fixed_abs, tag = 'smem constant byte address 0x4 - core index']
  #allocation1 [shape = 'u32[144,128]{1,0:T(1,128)}', space=vmem, size = 0x12000, scoped, tag = 'internal scratch']
  #allocation2 [shape = 'f32[8,128]{1,0:T(8,128)}', space=vmem, size = 0x1000, scoped, tag = 'scratch operand']
  #allocation3 [shape = 'f32[8,1]{1,0:T(8,128)}', space=vmem, size = 0x1000, scoped, tag = 'scratch operand']
  #allocation4 [shape = 'f32[8,1]{1,0:T(8,128)}', space=vmem, size = 0x1000, scoped, tag = 'scratch operand']
  #allocation5 [shape = 'f32[8,128]{1,0:T(8,128)}', space=vmem, size = 0x1000, scoped, tag = 'scratch operand']
  %s0 = inlined_call_operand.hbm [shape: f32[2,8,128], index: 0, kind: input, shape index: {}]
  %s1 = inlined_call_operand.hbm [shape: f32[2,128,128], index: 1, kind: input, shape index: {}]
  %s2 = inlined_call_operand.hbm [shape: f32[2,128,128], index: 2, kind: input, shape index: {}]
  %s3 = inlined_call_operand.vmem [shape: s8[2,8,128], index: 3, kind: input, shape index: {}]
  %s4 = inlined_call_operand.hbm [shape: f32[128,128], index: 4, kind: input, shape index: {}]
  %s5 = inlined_call_operand.vmem [shape: f32[1,128], index: 5, kind: input, shape index: {}]
  %s6 = inlined_call_operand.hbm [shape: f32[2,8,128], index: 6, kind: output, shape index: {}]
  %s7 = sld [smem:[#allocation0]]
  $region81: #{tpu_custom_call.1} parent=0
    _
  %s9 = ssub.s32 1, %s7
  %s10 = scalar_select 0, %s9, %s7
  $region1: #{tpu_custom_call.1} parent=0
    #allocation6 [shape = 'u8[8192]{0}', space=vmem, size = 0x2000, scoped, tag = 'input window, operand 0']
    #allocation7 [shape = 's32[2]{0}', space=sflag, size = 0x8, scoped, tag = 'scoped memory for tpu_custom_call.1']
    #allocation8 [shape = 's32[2]{0}', space=sflag, size = 0x8, scoped, tag = 'scoped memory for tpu_custom_call.1']
    #allocation9 [shape = 'u8[131072]{0}', space=vmem, size = 0x20000, scoped, tag = 'input window, operand 1']
    #allocation10 [shape = 's32[2]{0}', space=sflag, size = 0x8, scoped, tag = 'scoped memory for tpu_custom_call.1']
    #allocation11 [shape = 'u8[131072]{0}', space=vmem, size = 0x20000, scoped, tag = 'input window, operand 2']
    #allocation12 [shape = 'u8[65536]{0}', space=vmem, size = 0x10000, scoped, tag = 'input window, operand 4, single buffered']
    #allocation13 [shape = 's32[1]{0}', space=sflag, size = 0x4, scoped, tag = 'scoped memory for tpu_custom_call.1']
    #allocation14 [shape = 'u8[8192]{0}', space=vmem, size = 0x2000, scoped, tag = 'output window, operand 0']
    %11 = vsyncpa [#allocation7], 0
    %s12 = scalar_lea.sflag [#allocation7], 1
    %13 = vsyncpa %s12, 0
    %14 = vsyncpa [#allocation10], 0
    %s15 = scalar_lea.sflag [#allocation10], 1
    %16 = vsyncpa %s15, 0
    %17 = vsyncpa [#allocation13], 0
    %18 = vsyncpa [#allocation8], 0
    %s19 = scalar_lea.sflag [#allocation8], 1
    %20 = vsyncpa %s19, 0
    loop: start=0, step=1, limit=4
    $region2: #{tpu_custom_call.1} parent=1 // loop_pre_header
      _
    $region3: #{tpu_custom_call.1} parent=1 // loop_header
      %s22 = sphi 0, %s26
      %p23 = scmp.ge.s32.totalorder %s22, 4
      %s29 = sphi 0, %s48
      %s30 = sphi 0, %s44
      %s31 = sphi 0, %s40
      %s32 = sphi 0, %s29
      %s33 = sphi 0, %s30
      %s34 = sphi 0, %s31
      %s35 = sphi 0, %s32
      %s36 = sphi 0, %s33
      %s37 = sphi 0, %s34
      %s53 = sphi 0, %s55
      %s56 = sphi 0, %s53
      %s57 = sphi 0, %s56
      %s73 = sphi 0, %s57
      %s81 = sphi 0, %s83
      %s84 = sphi 0, %s81
      %s85 = sphi 0, %s84
      %s101 = sphi 0, %s85
      %s109 = sphi 0, %s111
      %s112 = sphi 0, %s109
      %s113 = sphi 0, %s112
      %s129 = sphi 0, %s113
      %s139 = sphi 0, %s141
      %s142 = sphi 0, %s139
      %s143 = sphi 0, %s142
      %s159 = sphi 0, %s143
      %s163 = sphi 0, %s163
      %s165 = sphi 0, %s163
      %s166 = sphi 0, %s165
      %s180 = sphi 0, %s166
      %s184 = sphi 0, %s184
      %s186 = sphi 0, %s184
      %s187 = sphi 0, %s186
      %s201 = sphi 0, %s187
      %s209 = sphi 0, %s211
      %s212 = sphi 0, %s209
      %s213 = sphi 0, %s212
      %s229 = sphi 0, %s213
    $region4: #{tpu_custom_call.1} parent=1 // loop_header_branch
      %25 = sbr.rel (%p23) target = $region8
    $region5: #{tpu_custom_call.1} parent=1 // loop_body
      %s27 = ssub.s32 %s22, 1
      %s28 = ssub.s32 %s22, 2
      %s38 = sadd.s32 1, %s31
      %p39 = scmp.ge.s32.totalorder %s38, 1
      %s40 = scalar_select %p39, 0, %s38
      %s41 = sadd.s32 1, %s30
      %s42 = scalar_select %p39, %s41, %s30
      %p43 = scmp.ge.s32.totalorder %s42, 1
      %s44 = scalar_select %p43, 0, %s42
      %s45 = sadd.s32 1, %s29
      %s46 = scalar_select %p43, %s45, %s29
      %p47 = scmp.ge.s32.totalorder %s46, 2
      %s48 = scalar_select %p47, 0, %s46
      %s49 = ssub.s32 %s29, %s48
      %s50 = ssub.s32 %s30, %s44
      %s51 = sor.u32 %s49, %s50
      %p52 = scmp.eq.s32.totalorder %s51, 0
      %s54 = sadd.s32 %s53, 1
      %s55 = scalar_select %p52, %s53, %s54
      %p58 = pneg %p52
      %p59 = scmp.eq.s32.totalorder %s22, 1
      %p60 = por %p58, %p59
      %p61 = scmp.ne.s32.totalorder %s53, %s56
      %p62 = scmp.eq.s32.totalorder %s22, 0
      %p63 = por %p61, %p62
      %p64 = scmp.ne.s32.totalorder %s53, %s56
      %p65 = scmp.eq.s32.totalorder %s27, 1
      %p66 = por %p64, %p65
      %p67 = scmp.ne.s32.totalorder %s56, %s57
      %p68 = scmp.eq.s32.totalorder %s27, 0
      %p69 = por %p67, %p68
      %p70 = scmp.ne.s32.totalorder %s56, %s57
      %p71 = scmp.eq.s32.totalorder %s28, 1
      %p72 = por %p70, %p71
      %p74 = scmp.ne.s32.totalorder %s57, %s73
      %p75 = scmp.eq.s32.totalorder %s28, 0
      %p76 = por %p74, %p75
      %s77 = ssub.s32 %s29, %s48
      %s78 = ssub.s32 %s31, %s40
      %s79 = sor.u32 %s77, %s78
      %p80 = scmp.eq.s32.totalorder %s79, 0
      %s82 = sadd.s32 %s81, 1
      %s83 = scalar_select %p80, %s81, %s82
      %p86 = pneg %p80
      %p87 = scmp.eq.s32.totalorder %s22, 1
      %p88 = por %p86, %p87
      %p89 = scmp.ne.s32.totalorder %s81, %s84
      %p90 = scmp.eq.s32.totalorder %s22, 0
      %p91 = por %p89, %p90
      %p92 = scmp.ne.s32.totalorder %s81, %s84
      %p93 = scmp.eq.s32.totalorder %s27, 1
      %p94 = por %p92, %p93
      %p95 = scmp.ne.s32.totalorder %s84, %s85
      %p96 = scmp.eq.s32.totalorder %s27, 0
      %p97 = por %p95, %p96
      %p98 = scmp.ne.s32.totalorder %s84, %s85
      %p99 = scmp.eq.s32.totalorder %s28, 1
      %p100 = por %p98, %p99
      %p102 = scmp.ne.s32.totalorder %s85, %s101
      %p103 = scmp.eq.s32.totalorder %s28, 0
      %p104 = por %p102, %p103
      %s105 = ssub.s32 %s29, %s48
      %s106 = ssub.s32 %s31, %s40
      %s107 = sor.u32 %s105, %s106
      %p108 = scmp.eq.s32.totalorder %s107, 0
      %s110 = sadd.s32 %s109, 1
      %s111 = scalar_select %p108, %s109, %s110
      %p114 = pneg %p108
      %p115 = scmp.eq.s32.totalorder %s22, 1
      %p116 = por %p114, %p115
      %p117 = scmp.ne.s32.totalorder %s109, %s112
      %p118 = scmp.eq.s32.totalorder %s22, 0
      %p119 = por %p117, %p118
      %p120 = scmp.ne.s32.totalorder %s109, %s112
      %p121 = scmp.eq.s32.totalorder %s27, 1
      %p122 = por %p120, %p121
      %p123 = scmp.ne.s32.totalorder %s112, %s113
      %p124 = scmp.eq.s32.totalorder %s27, 0
      %p125 = por %p123, %p124
      %p126 = scmp.ne.s32.totalorder %s112, %s113
      %p127 = scmp.eq.s32.totalorder %s28, 1
      %p128 = por %p126, %p127
      %p130 = scmp.ne.s32.totalorder %s113, %s129
      %p131 = scmp.eq.s32.totalorder %s28, 0
      %p132 = por %p130, %p131
      %s133 = ssub.s32 %s29, %s48
      %s134 = ssub.s32 %s30, %s44
      %s135 = sor.u32 %s133, %s134
      %s136 = ssub.s32 %s31, %s40
      %s137 = sor.u32 %s135, %s136
      %p138 = scmp.eq.s32.totalorder %s137, 0
      %s140 = sadd.s32 %s139, 1
      %s141 = scalar_select %p138, %s139, %s140
      %p144 = pneg %p138
      %p145 = scmp.eq.s32.totalorder %s22, 1
      %p146 = por %p144, %p145
      %p147 = scmp.ne.s32.totalorder %s139, %s142
      %p148 = scmp.eq.s32.totalorder %s22, 0
      %p149 = por %p147, %p148
      %p150 = scmp.ne.s32.totalorder %s139, %s142
      %p151 = scmp.eq.s32.totalorder %s27, 1
      %p152 = por %p150, %p151
      %p153 = scmp.ne.s32.totalorder %s142, %s143
      %p154 = scmp.eq.s32.totalorder %s27, 0
      %p155 = por %p153, %p154
      %p156 = scmp.ne.s32.totalorder %s142, %s143
      %p157 = scmp.eq.s32.totalorder %s28, 1
      %p158 = por %p156, %p157
      %p160 = scmp.ne.s32.totalorder %s143, %s159
      %p161 = scmp.eq.s32.totalorder %s28, 0
      %p162 = por %p160, %p161
      %s164 = sadd.s32 %s163, 1
      %p167 = scmp.eq.s32.totalorder %s22, 1
      %p168 = scmp.ne.s32.totalorder %s163, %s165
      %p169 = scmp.eq.s32.totalorder %s22, 0
      %p170 = por %p168, %p169
      %p171 = scmp.ne.s32.totalorder %s163, %s165
      %p172 = scmp.eq.s32.totalorder %s27, 1
      %p173 = por %p171, %p172
      %p174 = scmp.ne.s32.totalorder %s165, %s166
      %p175 = scmp.eq.s32.totalorder %s27, 0
      %p176 = por %p174, %p175
      %p177 = scmp.ne.s32.totalorder %s165, %s166
      %p178 = scmp.eq.s32.totalorder %s28, 1
      %p179 = por %p177, %p178
      %p181 = scmp.ne.s32.totalorder %s166, %s180
      %p182 = scmp.eq.s32.totalorder %s28, 0
      %p183 = por %p181, %p182
      %s185 = sadd.s32 %s184, 1
      %p188 = scmp.eq.s32.totalorder %s22, 1
      %p189 = scmp.ne.s32.totalorder %s184, %s186
      %p190 = scmp.eq.s32.totalorder %s22, 0
      %p191 = por %p189, %p190
      %p192 = scmp.ne.s32.totalorder %s184, %s186
      %p193 = scmp.eq.s32.totalorder %s27, 1
      %p194 = por %p192, %p193
      %p195 = scmp.ne.s32.totalorder %s186, %s187
      %p196 = scmp.eq.s32.totalorder %s27, 0
      %p197 = por %p195, %p196
      %p198 = scmp.ne.s32.totalorder %s186, %s187
      %p199 = scmp.eq.s32.totalorder %s28, 1
      %p200 = por %p198, %p199
      %p202 = scmp.ne.s32.totalorder %s187, %s201
      %p203 = scmp.eq.s32.totalorder %s28, 0
      %p204 = por %p202, %p203
      %s205 = ssub.s32 %s29, %s48
      %s206 = ssub.s32 %s30, %s44
      %s207 = sor.u32 %s205, %s206
      %p208 = scmp.eq.s32.totalorder %s207, 0
      %s210 = sadd.s32 %s209, 1
      %s211 = scalar_select %p208, %s209, %s210
      %p214 = pneg %p208
      %p215 = scmp.eq.s32.totalorder %s22, 1
      %p216 = por %p214, %p215
      %p217 = scmp.ne.s32.totalorder %s209, %s212
      %p218 = scmp.eq.s32.totalorder %s22, 0
      %p219 = por %p217, %p218
      %p220 = scmp.ne.s32.totalorder %s209, %s212
      %p221 = scmp.eq.s32.totalorder %s27, 1
      %p222 = por %p220, %p221
      %p223 = scmp.ne.s32.totalorder %s212, %s213
      %p224 = scmp.eq.s32.totalorder %s27, 0
      %p225 = por %p223, %p224
      %p226 = scmp.ne.s32.totalorder %s212, %s213
      %p227 = scmp.eq.s32.totalorder %s28, 1
      %p228 = por %p226, %p227
      %p230 = scmp.ne.s32.totalorder %s213, %s229
      %p231 = scmp.eq.s32.totalorder %s28, 0
      %p232 = por %p230, %p231
      %p233 = scmp.le.s32.totalorder 1, %s22
      %p234 = scmp.lt.s32.totalorder %s22, 3
      %p235 = pnand %p233, %p234
      %p236 = pneg %p235
      // Predicated region
      $region9: #{tpu_custom_call.1} parent=5 // pred_check
        _
      $region10: #{tpu_custom_call.1} parent=5 // pred_check_branch
        %238 = sbr.rel (%p235) target = $region12
      $region11: #{tpu_custom_call.1} parent=5 // pred_region
        %s239 = ssub.s32 %s22, 1
        // Predicated region
        $region13: #{tpu_custom_call.1} parent=11 // pred_check
          %p240 = pneg %p176
        $region14: #{tpu_custom_call.1} parent=11 // pred_check_branch
          %242 = sbr.rel (%p240) target = $region16
        $region15: #{tpu_custom_call.1} parent=11 // pred_region
          %s244 = ssub.s32 2048, 2048
          %245 = vsyncadd [#allocation13], %s244
          %s246 = sshll.u32 [#allocation12], 4
          %s247 = int_to_ptr.vmem [resolvable:$true] %s246
          %252 = dma.hbm_to_vmem [thread:$0]  %s4, 2048, %s247, [#allocation13], 128, 128, 8
        $region16: #{tpu_custom_call.1} parent=11 // pred_fallthru
          _
        // Predicated region
        $region17: #{tpu_custom_call.1} parent=11 // pred_check
          %p253 = pneg %p197
        $region18: #{tpu_custom_call.1} parent=11 // pred_check_branch
          %255 = sbr.rel (%p253) target = $region20
        $region19: #{tpu_custom_call.1} parent=11 // pred_region
          _
        $region20: #{tpu_custom_call.1} parent=11 // pred_fallthru
          _
      $region12: #{tpu_custom_call.1} parent=5 // pred_fallthru
        _
      %p256 = scmp.lt.s32.totalorder %s22, 2
      // Predicated region
      $region21: #{tpu_custom_call.1} parent=5 // pred_check
        %p257 = pneg %p256
      $region22: #{tpu_custom_call.1} parent=5 // pred_check_branch
        %259 = sbr.rel (%p257) target = $region24
      $region23: #{tpu_custom_call.1} parent=5 // pred_region
        // Predicated region
        $region25: #{tpu_custom_call.1} parent=23 // pred_check
          %p260 = pneg %p63
        $region26: #{tpu_custom_call.1} parent=23 // pred_check_branch
          %262 = sbr.rel (%p260) target = $region28
        $region27: #{tpu_custom_call.1} parent=23 // pred_region
          %s263 = sand.u32 %s53, 1
          %s264 = scalar_lea.sflag [#allocation7], %s263
          %s265 = sand.u32 %s53, 1
          %s266 = smul.addr %s265, 8
          %s267 = scalar_lea.vmem [#allocation6], %s266
          %s269 = ssub.s32 128, 128
          %270 = vsyncadd %s264, %s269
          %s271 = sadd.s32 %s30, %s29
          %s272 = smul.addr %s271, 128
          %s273 = scalar_lea.hbm %s0, %s272
          %s275 = sshll.u32 %s267, 4
          %s276 = int_to_ptr.vmem [resolvable:$true] %s275
          %278 = dma.hbm_to_vmem [thread:$0]  %s273, 128, %s276, %s264
        $region28: #{tpu_custom_call.1} parent=23 // pred_fallthru
          _
        // Predicated region
        $region29: #{tpu_custom_call.1} parent=23 // pred_check
          %p279 = pneg %p91
        $region30: #{tpu_custom_call.1} parent=23 // pred_check_branch
          %281 = sbr.rel (%p279) target = $region32
        $region31: #{tpu_custom_call.1} parent=23 // pred_region
          %s282 = sand.u32 %s22, 1
          %s283 = scalar_lea.sflag [#allocation10], %s282
          %s284 = sand.u32 %s81, 1
          %s285 = smul.addr %s284, 128
          %s286 = scalar_lea.vmem [#allocation9], %s285
          %s287 = smul.u32 16, %s31
          %s289 = ssub.s32 2048, 2048
          %290 = vsyncadd %s283, %s289
          %s291 = smul.addr %s29, 16
          %s292 = sadd.s32 %s287, %s291
          %s293 = smul.addr %s292, 128
          %s294 = scalar_lea.hbm %s1, %s293
          %s295 = sshll.u32 %s286, 4
          %s296 = int_to_ptr.vmem [resolvable:$true] %s295
          %301 = dma.hbm_to_vmem [thread:$0]  %s294, 2048, %s296, %s283, 128, 128, 8
        $region32: #{tpu_custom_call.1} parent=23 // pred_fallthru
          _
        // Predicated region
        $region33: #{tpu_custom_call.1} parent=23 // pred_check
          %p302 = pneg %p119
        $region34: #{tpu_custom_call.1} parent=23 // pred_check_branch
          %304 = sbr.rel (%p302) target = $region36
        $region35: #{tpu_custom_call.1} parent=23 // pred_region
          %s305 = sand.u32 %s22, 1
          %s306 = scalar_lea.sflag [#allocation10], %s305
          %s307 = sand.u32 %s109, 1
          %s308 = smul.addr %s307, 128
          %s309 = scalar_lea.vmem [#allocation11], %s308
          %s310 = smul.u32 16, %s31
          %s312 = ssub.s32 2048, 2048
          %313 = vsyncadd %s306, %s312
          %s314 = smul.addr %s29, 16
          %s315 = sadd.s32 %s310, %s314
          %s316 = smul.addr %s315, 128
          %s317 = scalar_lea.hbm %s2, %s316
          %s318 = sshll.u32 %s309, 4
          %s319 = int_to_ptr.vmem [resolvable:$true] %s318
          %324 = dma.hbm_to_vmem [thread:$0]  %s317, 2048, %s319, %s306, 128, 128, 8
        $region36: #{tpu_custom_call.1} parent=23 // pred_fallthru
          _
        // Predicated region
        $region37: #{tpu_custom_call.1} parent=23 // pred_check
          %p325 = pneg %p149
        $region38: #{tpu_custom_call.1} parent=23 // pred_check_branch
          %327 = sbr.rel (%p325) target = $region40
        $region39: #{tpu_custom_call.1} parent=23 // pred_region
          %p328 = scmp.lt.s32.totalorder %s29, 1
          %s329 = scalar_select %p328, %s29, 1
          %p330 = scmp.lt.s32.totalorder %s30, 0
          %s331 = scalar_select %p330, %s30, 0
          %p332 = scmp.lt.s32.totalorder %s31, 0
          %s333 = scalar_select %p332, %s31, 0
          %s334 = sadd.s32 %s333, %s331
          %s335 = sadd.s32 %s334, %s329
          %s336 = smul.addr %s335, 2
          %s337 = scalar_lea.vmem %s3, %s336
        $region40: #{tpu_custom_call.1} parent=23 // pred_fallthru
          _
      $region24: #{tpu_custom_call.1} parent=5 // pred_fallthru
        _
      %p338 = scmp.le.s32.totalorder 1, %s22
      %p339 = scmp.lt.s32.totalorder %s22, 3
      %p340 = pnand %p338, %p339
      %p341 = pneg %p340
      // Predicated region
      $region41: #{tpu_custom_call.1} parent=5 // pred_check
        _
      $region42: #{tpu_custom_call.1} parent=5 // pred_check_branch
        %343 = sbr.rel (%p340) target = $region44
      $region43: #{tpu_custom_call.1} parent=5 // pred_region
        %s344 = ssub.s32 %s22, 1
        %s345 = sand.u32 %s56, 1
        %s346 = scalar_lea.sflag [#allocation7], %s345
        %s347 = sand.u32 %s56, 1
        %s348 = smul.addr %s347, 8
        %s349 = scalar_lea.vmem [#allocation6], %s348
        // Predicated region
        $region45: #{tpu_custom_call.1} parent=43 // pred_check
          %p350 = pneg %p69
        $region46: #{tpu_custom_call.1} parent=43 // pred_check_branch
          %352 = sbr.rel (%p350) target = $region48
        $region47: #{tpu_custom_call.1} parent=43 // pred_region
          %353 = dma.done %s346, 128
        $region48: #{tpu_custom_call.1} parent=43 // pred_fallthru
          _
        %s354 = sand.u32 %s27, 1
        %s355 = scalar_lea.sflag [#allocation10], %s354
        %s356 = sand.u32 %s84, 1
        %s357 = smul.addr %s356, 128
        %s358 = scalar_lea.vmem [#allocation9], %s357
        // Predicated region
        $region49: #{tpu_custom_call.1} parent=43 // pred_check
          %p359 = pneg %p97
        $region50: #{tpu_custom_call.1} parent=43 // pred_check_branch
          %361 = sbr.rel (%p359) target = $region52
        $region51: #{tpu_custom_call.1} parent=43 // pred_region
          %362 = dma.done %s355, 2048
        $region52: #{tpu_custom_call.1} parent=43 // pred_fallthru
          _
        %s363 = sand.u32 %s27, 1
        %s364 = scalar_lea.sflag [#allocation10], %s363
        %s365 = sand.u32 %s112, 1
        %s366 = smul.addr %s365, 128
        %s367 = scalar_lea.vmem [#allocation11], %s366
        // Predicated region
        $region53: #{tpu_custom_call.1} parent=43 // pred_check
          %p368 = pneg %p125
        $region54: #{tpu_custom_call.1} parent=43 // pred_check_branch
          %370 = sbr.rel (%p368) target = $region56
        $region55: #{tpu_custom_call.1} parent=43 // pred_region
          %371 = dma.done %s364, 2048
        $region56: #{tpu_custom_call.1} parent=43 // pred_fallthru
          _
        // Predicated region
        $region57: #{tpu_custom_call.1} parent=43 // pred_check
          %p372 = pneg %p176
        $region58: #{tpu_custom_call.1} parent=43 // pred_check_branch
          %374 = sbr.rel (%p372) target = $region60
        $region59: #{tpu_custom_call.1} parent=43 // pred_region
          %375 = dma.done [#allocation13], 2048
        $region60: #{tpu_custom_call.1} parent=43 // pred_fallthru
          _
        %s376 = sand.u32 %s56, 1
        %s377 = scalar_lea.sflag [#allocation7], %s376
        %s378 = sand.u32 %s56, 1
        %s379 = smul.addr %s378, 8
        %s380 = scalar_lea.vmem [#allocation6], %s379
        %p381 = pneg %p69
        %p382 = pneg %p66
        %s383 = sand.u32 %s27, 1
        %s384 = scalar_lea.sflag [#allocation10], %s383
        %s385 = sand.u32 %s84, 1
        %s386 = smul.addr %s385, 128
        %s387 = scalar_lea.vmem [#allocation9], %s386
        %p388 = pneg %p97
        %p389 = pneg %p94
        %s390 = sand.u32 %s27, 1
        %s391 = scalar_lea.sflag [#allocation10], %s390
        %s392 = sand.u32 %s112, 1
        %s393 = smul.addr %s392, 128
        %s394 = scalar_lea.vmem [#allocation11], %s393
        %p395 = pneg %p125
        %p396 = pneg %p122
        %p397 = scmp.lt.s32.totalorder %s32, 1
        %s398 = scalar_select %p397, %s32, 1
        %p399 = scmp.lt.s32.totalorder %s33, 0
        %s400 = scalar_select %p399, %s33, 0
        %p401 = scmp.lt.s32.totalorder %s34, 0
        %s402 = scalar_select %p401, %s34, 0
        %s403 = sadd.s32 %s402, %s400
        %s404 = sadd.s32 %s403, %s398
        %s405 = smul.addr %s404, 2
        %s406 = scalar_lea.vmem %s3, %s405
        %p407 = pneg %p155
        %p408 = pneg %p152
        %p409 = pneg %p176
        %p410 = pneg %p173
        %p411 = pneg %p197
        %p412 = pneg %p194
        %p413 = pneg %p225
        %p414 = pneg %p222
        %s415 = sand.u32 %s212, 1
        %s416 = scalar_lea.sflag [#allocation8], %s415
        %s417 = sand.u32 %s212, 1
        %s418 = smul.addr %s417, 8
        %s419 = scalar_lea.vmem [#allocation14], %s418
        %s420 = smul.u32 16, %s34
        %s421 = smul.u32 16, %s34
        %p422 = scmp.lt.s32.totalorder %s32, 1
        %s423 = scalar_select %p422, %s32, 1
        %p424 = scmp.lt.s32.totalorder %s33, 0
        %s425 = scalar_select %p424, %s33, 0
        %p426 = scmp.lt.s32.totalorder %s34, 0
        %s427 = scalar_select %p426, %s34, 0
        %s428 = sadd.s32 %s427, %s425
        %s429 = sadd.s32 %s428, %s423
        %s430 = smul.addr %s429, 2
        %s431 = scalar_lea.vmem %s3, %s430
        %p432 = scmp.eq.s32.totalorder %s34, 0
        // Predicated region
        $region61: #{tpu_custom_call.1} parent=43 // pred_check
          %p433 = pneg %p432
        $region62: #{tpu_custom_call.1} parent=43 // pred_check_branch
          %435 = sbr.rel (%p433) target = $region64
        $region63: #{tpu_custom_call.1} parent=43 // pred_region
          %v436 = vld [vmem:[%s349] sm:$0xff]
          %v437 = vld [vmem:[#allocation12] sm:$0xff]
          %v438 = vld [vmem:[#allocation12 + $0x8] sm:$0xff]
          %v439 = vld [vmem:[#allocation12 + $0x10] sm:$0xff]
          %v440 = vld [vmem:[#allocation12 + $0x18] sm:$0xff]
          %v441 = vld [vmem:[#allocation12 + $0x20] sm:$0xff]
          %v442 = vld [vmem:[#allocation12 + $0x28] sm:$0xff]
          %v443 = vld [vmem:[#allocation12 + $0x30] sm:$0xff]
          %v444 = vld [vmem:[#allocation12 + $0x38] sm:$0xff]
          %v445 = vld [vmem:[#allocation12 + $0x40] sm:$0xff]
          %v446 = vld [vmem:[#allocation12 + $0x48] sm:$0xff]
          %v447 = vld [vmem:[#allocation12 + $0x50] sm:$0xff]
          %v448 = vld [vmem:[#allocation12 + $0x58] sm:$0xff]
          %v449 = vld [vmem:[#allocation12 + $0x60] sm:$0xff]
          %v450 = vld [vmem:[#allocation12 + $0x68] sm:$0xff]
          %v451 = vld [vmem:[#allocation12 + $0x70] sm:$0xff]
          %v452 = vld [vmem:[#allocation12 + $0x78] sm:$0xff]
          %v453 = vld [vmem:[%s5] sm:$0x1]
          %v455 = vlaneseq
          %v456 = vshrl.u32 %v455, 7
          %v457 = vsub.s32 0, %v456
          %v458 = vrot.slane %v453, %v457
          %460 = vmatprep.subr.mxu0 0.0
          %461 = vmatpush1.msra.mxu0 %v437
          %462 = vmatprep.subr.mxu0 0.0
          %463 = vmatpush1.msra.mxu0 %v438
          %464 = vmatprep.subr.mxu0 0.0
          %465 = vmatpush1.msra.mxu0 %v439
          %466 = vmatprep.subr.mxu0 0.0
          %467 = vmatpush1.msra.mxu0 %v440
          %468 = vmatprep.subr.mxu0 0.0
          %469 = vmatpush1.msra.mxu0 %v441
          %470 = vmatprep.subr.mxu0 0.0
          %471 = vmatpush1.msra.mxu0 %v442
          %472 = vmatprep.subr.mxu0 0.0
          %473 = vmatpush1.msra.mxu0 %v443
          %474 = vmatprep.subr.mxu0 0.0
          %475 = vmatpush1.msra.mxu0 %v444
          %476 = vmatprep.subr.mxu0 0.0
          %477 = vmatpush1.msra.mxu0 %v445
          %478 = vmatprep.subr.mxu0 0.0
          %479 = vmatpush1.msra.mxu0 %v446
          %480 = vmatprep.subr.mxu0 0.0
          %481 = vmatpush1.msra.mxu0 %v447
          %482 = vmatprep.subr.mxu0 0.0
          %483 = vmatpush1.msra.mxu0 %v448
          %484 = vmatprep.subr.mxu0 0.0
          %485 = vmatpush1.msra.mxu0 %v449
          %486 = vmatprep.subr.mxu0 0.0
          %487 = vmatpush1.msra.mxu0 %v450
          %488 = vmatprep.subr.mxu0 0.0
          %489 = vmatpush1.msra.mxu0 %v451
          %490 = vmatprep.subr.mxu0 0.0
          %491 = vmatpush1.msra.mxu0 %v452
          %492 = vmatprep.subr.mxu0 0.0
          %493 = vmatpush1.msra.mxu0 0.0
          %494 = vmatprep.subr.mxu0 0.0
          %495 = vmatpush1.msra.mxu0 0.0
          %496 = vmatprep.subr.mxu0 0.0
          %497 = vmatpush1.msra.mxu0 0.0
          %498 = vmatprep.subr.mxu0 0.0
          %499 = vmatpush1.msra.mxu0 0.0
          %500 = vmatprep.subr.mxu0 0.0
          %501 = vmatpush1.msra.mxu0 0.0
          %502 = vmatprep.subr.mxu0 0.0
          %503 = vmatpush1.msra.mxu0 0.0
          %504 = vmatprep.subr.mxu0 0.0
          %505 = vmatpush1.msra.mxu0 0.0
          %506 = vmatprep.subr.mxu0 0.0
          %507 = vmatpush1.msra.mxu0 0.0
          %508 = vmatprep.subr.mxu0 0.0
          %509 = vmatpush1.msra.mxu0 0.0
          %510 = vmatprep.subr.mxu0 0.0
          %511 = vmatpush1.msra.mxu0 0.0
          %512 = vmatprep.subr.mxu0 0.0
          %513 = vmatpush1.msra.mxu0 0.0
          %514 = vmatprep.subr.mxu0 0.0
          %515 = vmatpush1.msra.mxu0 0.0
          %516 = vmatprep.subr.mxu0 0.0
          %517 = vmatpush1.msra.mxu0 0.0
          %518 = vmatprep.subr.mxu0 0.0
          %519 = vmatpush1.msra.mxu0 0.0
          %520 = vmatprep.subr.mxu0 0.0
          %521 = vmatpush1.msra.mxu0 0.0
          %522 = vmatprep.subr.mxu0 0.0
          %523 = vmatpush1.msra.mxu0 0.0
          %524 = vmatprep.mubr.f32.mxu0 0.0
          %525 = vmatmul.mubr.f32.gmra.mrb[0].mxu0 %v436
          %v526 = vpop.f32.mrb[0].mxu0
          %v527 = vadd.f32 %v458, %v526
          %v528 = vpop.f32.mrb[0].mxu0
          %529 = vdwg.mxu0
          %530 = vst [vmem:[#allocation2] sm:$0xff] %v527
          %vm531 = vcmask 7168
          %532 = vst.msk [vmem:[#allocation3] sm:$0xff] %vm531, -inf
          %533 = vst.msk [vmem:[#allocation4] sm:$0xff] %vm531, 0.0
          %534 = vst [vmem:[#allocation5] sm:$0xff] 0.0
        $region64: #{tpu_custom_call.1} parent=43 // pred_fallthru
          _
        %v535 = vld [vmem:[#allocation2] sm:$0xff]
        %v536 = vld [vmem:[%s358] sm:$0xff]
        %v537 = vld [vmem:[%s358 + $0x8] sm:$0xff]
        %v538 = vld [vmem:[%s358 + $0x10] sm:$0xff]
        %v539 = vld [vmem:[%s358 + $0x18] sm:$0xff]
        %v540 = vld [vmem:[%s358 + $0x20] sm:$0xff]
        %v541 = vld [vmem:[%s358 + $0x28] sm:$0xff]
        %v542 = vld [vmem:[%s358 + $0x30] sm:$0xff]
        %v543 = vld [vmem:[%s358 + $0x38] sm:$0xff]
        %v544 = vld [vmem:[%s358 + $0x40] sm:$0xff]
        %v545 = vld [vmem:[%s358 + $0x48] sm:$0xff]
        %v546 = vld [vmem:[%s358 + $0x50] sm:$0xff]
        %v547 = vld [vmem:[%s358 + $0x58] sm:$0xff]
        %v548 = vld [vmem:[%s358 + $0x60] sm:$0xff]
        %v549 = vld [vmem:[%s358 + $0x68] sm:$0xff]
        %v550 = vld [vmem:[%s358 + $0x70] sm:$0xff]
        %v551 = vld [vmem:[%s358 + $0x78] sm:$0xff]
        %v552 = vld [vmem:[%s367] sm:$0xff]
        %v553 = vld [vmem:[%s367 + $0x8] sm:$0xff]
        %v554 = vld [vmem:[%s367 + $0x10] sm:$0xff]
        %v555 = vld [vmem:[%s367 + $0x18] sm:$0xff]
        %v556 = vld [vmem:[%s367 + $0x20] sm:$0xff]
        %v557 = vld [vmem:[%s367 + $0x28] sm:$0xff]
        %v558 = vld [vmem:[%s367 + $0x30] sm:$0xff]
        %v559 = vld [vmem:[%s367 + $0x38] sm:$0xff]
        %v560 = vld [vmem:[%s367 + $0x40] sm:$0xff]
        %v561 = vld [vmem:[%s367 + $0x48] sm:$0xff]
        %v562 = vld [vmem:[%s367 + $0x50] sm:$0xff]
        %v563 = vld [vmem:[%s367 + $0x58] sm:$0xff]
        %v564 = vld [vmem:[%s367 + $0x60] sm:$0xff]
        %v565 = vld [vmem:[%s367 + $0x68] sm:$0xff]
        %v566 = vld [vmem:[%s367 + $0x70] sm:$0xff]
        %v567 = vld [vmem:[%s367 + $0x78] sm:$0xff]
        %568 = vmatprep.subr.mxu0 0.0
        %569 = vmatpush1.xpose.msra.mxu0 %v536
        %570 = vmatprep.subr.mxu0 0.0
        %571 = vmatpush1.xpose.msra.mxu0 %v537
        %572 = vmatprep.subr.mxu0 0.0
        %573 = vmatpush1.xpose.msra.mxu0 %v538
        %574 = vmatprep.subr.mxu0 0.0
        %575 = vmatpush1.xpose.msra.mxu0 %v539
        %576 = vmatprep.subr.mxu0 0.0
        %577 = vmatpush1.xpose.msra.mxu0 %v540
        %578 = vmatprep.subr.mxu0 0.0
        %579 = vmatpush1.xpose.msra.mxu0 %v541
        %580 = vmatprep.subr.mxu0 0.0
        %581 = vmatpush1.xpose.msra.mxu0 %v542
        %582 = vmatprep.subr.mxu0 0.0
        %583 = vmatpush1.xpose.msra.mxu0 %v543
        %584 = vmatprep.subr.mxu0 0.0
        %585 = vmatpush1.xpose.msra.mxu0 %v544
        %586 = vmatprep.subr.mxu0 0.0
        %587 = vmatpush1.xpose.msra.mxu0 %v545
        %588 = vmatprep.subr.mxu0 0.0
        %589 = vmatpush1.xpose.msra.mxu0 %v546
        %590 = vmatprep.subr.mxu0 0.0
        %591 = vmatpush1.xpose.msra.mxu0 %v547
        %592 = vmatprep.subr.mxu0 0.0
        %593 = vmatpush1.xpose.msra.mxu0 %v548
        %594 = vmatprep.subr.mxu0 0.0
        %595 = vmatpush1.xpose.msra.mxu0 %v549
        %596 = vmatprep.subr.mxu0 0.0
        %597 = vmatpush1.xpose.msra.mxu0 %v550
        %598 = vmatprep.subr.mxu0 0.0
        %599 = vmatpush1.xpose.msra.mxu0 %v551
        %600 = vmatprep.subr.mxu0 0.0
        %601 = vmatpush1.xpose.msra.mxu0 0.0
        %602 = vmatprep.subr.mxu0 0.0
        %603 = vmatpush1.xpose.msra.mxu0 0.0
        %604 = vmatprep.subr.mxu0 0.0
        %605 = vmatpush1.xpose.msra.mxu0 0.0
        %606 = vmatprep.subr.mxu0 0.0
        %607 = vmatpush1.xpose.msra.mxu0 0.0
        %608 = vmatprep.subr.mxu0 0.0
        %609 = vmatpush1.xpose.msra.mxu0 0.0
        %610 = vmatprep.subr.mxu0 0.0
        %611 = vmatpush1.xpose.msra.mxu0 0.0
        %612 = vmatprep.subr.mxu0 0.0
        %613 = vmatpush1.xpose.msra.mxu0 0.0
        %614 = vmatprep.subr.mxu0 0.0
        %615 = vmatpush1.xpose.msra.mxu0 0.0
        %616 = vmatprep.subr.mxu0 0.0
        %617 = vmatpush1.xpose.msra.mxu0 0.0
        %618 = vmatprep.subr.mxu0 0.0
        %619 = vmatpush1.xpose.msra.mxu0 0.0
        %620 = vmatprep.subr.mxu0 0.0
        %621 = vmatpush1.xpose.msra.mxu0 0.0
        %622 = vmatprep.subr.mxu0 0.0
        %623 = vmatpush1.xpose.msra.mxu0 0.0
        %624 = vmatprep.subr.mxu0 0.0
        %625 = vmatpush1.xpose.msra.mxu0 0.0
        %626 = vmatprep.subr.mxu0 0.0
        %627 = vmatpush1.xpose.msra.mxu0 0.0
        %628 = vmatprep.subr.mxu0 0.0
        %629 = vmatpush1.xpose.msra.mxu0 0.0
        %630 = vmatprep.subr.mxu0 0.0
        %631 = vmatpush1.xpose.msra.mxu0 0.0
        %632 = vmatprep.mubr.f32.mxu0 0.0
        %633 = vmatmul.mubr.f32.gmra.mrb[0].mxu0 %v535
        %v634 = vpop.f32.mrb[0].mxu0
        %v635 = vadd.f32 0.0, %v634
        %v636 = vpop.f32.mrb[0].mxu0
        %637 = vdwg.mxu0
        %v638 = vld [vmem:[%s431] sm:$0x3]
        %v639 = vunpack.c.0.s8 %v638
        %vm640 = vcmp.ne.s32.totalorder %v639, 0
        %v641 = vsub.f32 %v635, 1000000.0
        %v642 = vsel %vm640, %v635, %v641
        %v643 = vld [vmem:[#allocation3] sm:$0xff]
        %644 = vmax.xlane.f32.xlu0 %v642
        %v645 = vpop.xlane.xlu0 %644
        %v646 = vmax.f32 %v643, %v645
        %v647 = vsub.f32 %v643, %v646
        %v648 = vmul.f32 %v647, 1.442695
        %v649 = vpow.pop %v648
        %651 = vset.pattern.permute.xlu0 0
        %652 = vperm.xlu0 %651, %v646
        %v653 = vpop.permute.xlu0 %652
        %v655 = vsub.f32 %v642, %v653
        %v656 = vmul.f32 %v655, 1.442695
        %v657 = vpow.pop %v656
        %v658 = vld [vmem:[#allocation4] sm:$0xff]
        %v659 = vmul.f32 %v649, %v658
        %660 = vadd.xlane.f32.xlu0 %v657
        %v661 = vpop.xlane.xlu0 %660
        %v662 = vadd.f32 %v659, %v661
        %vm663 = vcmask 7168
        %664 = vst.msk [vmem:[#allocation4] sm:$0xff] %vm663, %v662
        %v665 = vld [vmem:[#allocation5] sm:$0xff]
        %667 = vset.pattern.permute.xlu0 0
        %668 = vperm.xlu0 %667, %v649
        %v669 = vpop.permute.xlu0 %668
        %v671 = vmul.f32 %v669, %v665
        %672 = vmatprep.subr.mxu0 0.0
        %673 = vmatpush1.msra.mxu0 %v552
        %674 = vmatprep.subr.mxu0 0.0
        %675 = vmatpush1.msra.mxu0 %v553
        %676 = vmatprep.subr.mxu0 0.0
        %677 = vmatpush1.msra.mxu0 %v554
        %678 = vmatprep.subr.mxu0 0.0
        %679 = vmatpush1.msra.mxu0 %v555
        %680 = vmatprep.subr.mxu0 0.0
        %681 = vmatpush1.msra.mxu0 %v556
        %682 = vmatprep.subr.mxu0 0.0
        %683 = vmatpush1.msra.mxu0 %v557
        %684 = vmatprep.subr.mxu0 0.0
        %685 = vmatpush1.msra.mxu0 %v558
        %686 = vmatprep.subr.mxu0 0.0
        %687 = vmatpush1.msra.mxu0 %v559
        %688 = vmatprep.subr.mxu0 0.0
        %689 = vmatpush1.msra.mxu0 %v560
        %690 = vmatprep.subr.mxu0 0.0
        %691 = vmatpush1.msra.mxu0 %v561
        %692 = vmatprep.subr.mxu0 0.0
        %693 = vmatpush1.msra.mxu0 %v562
        %694 = vmatprep.subr.mxu0 0.0
        %695 = vmatpush1.msra.mxu0 %v563
        %696 = vmatprep.subr.mxu0 0.0
        %697 = vmatpush1.msra.mxu0 %v564
        %698 = vmatprep.subr.mxu0 0.0
        %699 = vmatpush1.msra.mxu0 %v565
        %700 = vmatprep.subr.mxu0 0.0
        %701 = vmatpush1.msra.mxu0 %v566
        %702 = vmatprep.subr.mxu0 0.0
        %703 = vmatpush1.msra.mxu0 %v567
        %704 = vmatprep.subr.mxu0 0.0
        %705 = vmatpush1.msra.mxu0 0.0
        %706 = vmatprep.subr.mxu0 0.0
        %707 = vmatpush1.msra.mxu0 0.0
        %708 = vmatprep.subr.mxu0 0.0
        %709 = vmatpush1.msra.mxu0 0.0
        %710 = vmatprep.subr.mxu0 0.0
        %711 = vmatpush1.msra.mxu0 0.0
        %712 = vmatprep.subr.mxu0 0.0
        %713 = vmatpush1.msra.mxu0 0.0
        %714 = vmatprep.subr.mxu0 0.0
        %715 = vmatpush1.msra.mxu0 0.0
        %716 = vmatprep.subr.mxu0 0.0
        %717 = vmatpush1.msra.mxu0 0.0
        %718 = vmatprep.subr.mxu0 0.0
        %719 = vmatpush1.msra.mxu0 0.0
        %720 = vmatprep.subr.mxu0 0.0
        %721 = vmatpush1.msra.mxu0 0.0
        %722 = vmatprep.subr.mxu0 0.0
        %723 = vmatpush1.msra.mxu0 0.0
        %724 = vmatprep.subr.mxu0 0.0
        %725 = vmatpush1.msra.mxu0 0.0
        %726 = vmatprep.subr.mxu0 0.0
        %727 = vmatpush1.msra.mxu0 0.0
        %728 = vmatprep.subr.mxu0 0.0
        %729 = vmatpush1.msra.mxu0 0.0
        %730 = vmatprep.subr.mxu0 0.0
        %731 = vmatpush1.msra.mxu0 0.0
        %732 = vmatprep.subr.mxu0 0.0
        %733 = vmatpush1.msra.mxu0 0.0
        %734 = vmatprep.subr.mxu0 0.0
        %735 = vmatpush1.msra.mxu0 0.0
        %736 = vmatprep.mubr.f32.mxu0 0.0
        %737 = vmatmul.mubr.f32.gmra.mrb[0].mxu0 %v657
        %v738 = vpop.f32.mrb[0].mxu0
        %v739 = vadd.f32 0.0, %v738
        %v740 = vpop.f32.mrb[0].mxu0
        %741 = vdwg.mxu0
        %v742 = vadd.f32 %v671, %v739
        %743 = vst [vmem:[#allocation5] sm:$0xff] %v742
        %744 = vst.msk [vmem:[#allocation3] sm:$0xff] %vm663, %v646
        // Predicated region
        $region65: #{tpu_custom_call.1} parent=43 // pred_check
          %p745 = pneg %p432
        $region66: #{tpu_custom_call.1} parent=43 // pred_check_branch
          %747 = sbr.rel (%p745) target = $region68
        $region67: #{tpu_custom_call.1} parent=43 // pred_region
          %v748 = vld [vmem:[#allocation4] sm:$0xff]
          %v749 = vrcp.pop %v748
          %v750 = vmul.f32 1.0, %v749
          %v751 = vld [vmem:[#allocation5] sm:$0xff]
          %753 = vset.pattern.permute.xlu0 0
          %754 = vperm.xlu0 %753, %v750
          %v755 = vpop.permute.xlu0 %754
          %v757 = vmul.f32 %v751, %v755
          %758 = vst [vmem:[%s419] sm:$0xff] %v757
        $region68: #{tpu_custom_call.1} parent=43 // pred_fallthru
          _
        %s759 = sand.u32 %s212, 1
        %s760 = scalar_lea.sflag [#allocation8], %s759
        %s761 = sand.u32 %s212, 1
        %s762 = smul.addr %s761, 8
        %s763 = scalar_lea.vmem [#allocation14], %s762
        // Predicated region
        $region69: #{tpu_custom_call.1} parent=43 // pred_check
          %p764 = pneg %p222
        $region70: #{tpu_custom_call.1} parent=43 // pred_check_branch
          %766 = sbr.rel (%p764) target = $region72
        $region71: #{tpu_custom_call.1} parent=43 // pred_region
          %s768 = ssub.s32 128, 128
          %769 = vsyncadd %s760, %s768
          %s770 = sadd.s32 %s33, %s32
          %s771 = smul.addr %s770, 128
          %s772 = scalar_lea.hbm %s6, %s771
          %s774 = sshll.u32 %s763, 4
          %s775 = int_to_ptr.vmem [resolvable:$true] %s774
          %777 = dma.vmem_to_hbm [thread:$0]  %s775, 128, %s772, %s760
        $region72: #{tpu_custom_call.1} parent=43 // pred_fallthru
          _
      $region44: #{tpu_custom_call.1} parent=5 // pred_fallthru
        _
      %p778 = scmp.le.s32.totalorder 2, %s22
      // Predicated region
      $region73: #{tpu_custom_call.1} parent=5 // pred_check
        %p779 = pneg %p778
      $region74: #{tpu_custom_call.1} parent=5 // pred_check_branch
        %781 = sbr.rel (%p779) target = $region76
      $region75: #{tpu_custom_call.1} parent=5 // pred_region
        %s782 = ssub.s32 %s22, 2
        // Predicated region
        $region77: #{tpu_custom_call.1} parent=75 // pred_check
          %p783 = pneg %p228
        $region78: #{tpu_custom_call.1} parent=75 // pred_check_branch
          %785 = sbr.rel (%p783) target = $region80
        $region79: #{tpu_custom_call.1} parent=75 // pred_region
          %s786 = sand.u32 %s213, 1
          %s787 = scalar_lea.sflag [#allocation8], %s786
          %s788 = sand.u32 %s213, 1
          %s789 = smul.addr %s788, 8
          %s790 = scalar_lea.vmem [#allocation14], %s789
          %791 = dma.done %s787, 128
        $region80: #{tpu_custom_call.1} parent=75 // pred_fallthru
          _
      $region76: #{tpu_custom_call.1} parent=5 // pred_fallthru
        _
    $region6: #{tpu_custom_call.1} parent=1 // loop_footer
      %s26 = sadd.s32 1, %s22
    $region7: #{tpu_custom_call.1} parent=1 // loop_footer_branch
      %21 = sbr.rel target = $region3
    $region8: #{tpu_custom_call.1} parent=1 // loop_exit
      _
    %792 = vsyncpa [#allocation7], 1
    %s793 = scalar_lea.sflag [#allocation7], 1
    %794 = vsyncpa %s793, 1
    %795 = vsyncpa [#allocation10], 1
    %s796 = scalar_lea.sflag [#allocation10], 1
    %797 = vsyncpa %s796, 1
    %798 = vsyncpa [#allocation13], 1
    %799 = vsyncpa [#allocation8], 1
    %s800 = scalar_lea.sflag [#allocation8], 1
    %801 = vsyncpa %s800, 1

</llo_original>
